<compile_context>
chip_gen: v5e
topology: v5e:2x2
jax: 0.10.0
libtpu: 0.0.40
codegen_flags: <defaults>
</compile_context>

<pallas_src>
import math

import jax
import jax.numpy as jnp
from jax.experimental import pallas as pl
from jax.experimental.pallas import tpu as pltpu

DP = 128  # lane-dense padded hidden width (multiple of 128; use 256 on v6e/v7x if D > 128)


def _air_gcnii_kernel(scal_ref,                 # SMEM (2L,): [beta_0, bg_0, beta_1, bg_1, ...]
                      adj_ref,                  # VMEM (N, N)   bf16 — resident, single copy
                      h0_ref,                   # VMEM (N, DP)  f32  — resident
                      wT_ref,                   # VMEM (L, DP, DP) bf16 — all layer weights
                      bwg_ref,                  # VMEM (L, 3, DP)  f32  — [b, wga, wgb]
                      o_ref):                   # VMEM (N, DP)  f32 — output == layer carry
    num_layers = wT_ref.shape[0]

    # h starts as h0 (input dropout is identity at inference); o_ref carries h across layers.
    o_ref[...] = h0_ref[...]

    # Static (unrolled) layer loop — L is a small trace-time constant.
    # TODO(synk): for very deep stacks switch to lax.fori_loop to bound live ranges.
    for l in range(num_layers):
        beta = scal_ref[2 * l]
        bg = scal_ref[2 * l + 1]
        h0 = h0_ref[...]
        h = o_ref[...]

        # Propagation h_prop = A_hat @ h   (A_hat = D^-1/2 A D^-1/2 precomputed in wrapper).
        hp = jnp.dot(adj_ref[...], h.astype(jnp.bfloat16),
                     preferred_element_type=jnp.float32)

        bwg = bwg_ref[l]                 # (3, DP): rows = [linear bias, gate w (hp), gate w (h0)]
        b = bwg[0:1, :]
        wga = bwg[1:2, :]
        wgb = bwg[2:3, :]

        # TODO(synk): GatedLayer source not provided in the reference file; assumed the
        # standard AIR-GNN adaptive-initial-residual gate:
        #   gate = sigmoid(Linear_{2D->1}([h_prop || h0])),  out = gate*h_prop + (1-gate)*h0
        logit = jnp.sum(hp * wga + h0 * wgb, axis=-1, keepdims=True) + bg   # (N, 1)
        gate = jax.nn.sigmoid(logit)
        hg = h0 + gate * (hp - h0)                                          # FMA form

        # GCNII identity mapping: (1-beta)*hg + beta*(hg @ W^T + b)
        lin = jnp.dot(hg.astype(jnp.bfloat16), wT_ref[l],
                      preferred_element_type=jnp.float32) + b
        h_new = hg + beta * (lin - hg)                                      # FMA form

        # Outer AIRGCNII activation: LeakyReLU(negative_slope=0.01)
        h_new = jnp.maximum(h_new, 0.01 * h_new)
        o_ref[...] = h_new


def air_gcnii_forward(adj_sl, features, layer_params, betas):
    """AIRGCNII.forward (inference) — all layers fused into one grid-less pallas_call."""
    N, D = features.shape
    L = len(layer_params)
    assert D <= DP, "raise DP (multiple of 128; 256 preferred on v6e/v7x) for wider hidden dims"

    # Symmetric normalization of the self-loop graph; constant across layers -> precompute.
    deg = jnp.clip(jnp.sum(adj_sl, axis=1), 1.0, None)
    norm = deg ** -0.5
    adj_hat = (adj_sl * norm[:, None] * norm[None, :]).astype(jnp.bfloat16)   # bf16 on the MXU

    # Lane-dense padding of the hidden dim (padded lanes stay exactly zero through all layers).
    h0 = jnp.zeros((N, DP), jnp.float32).at[:, :D].set(features.astype(jnp.float32))

    # Stack per-layer parameters: W^T (bf16), packed small tensors, packed scalars.
    wT = jnp.zeros((L, DP, DP), jnp.bfloat16)
    bwg = jnp.zeros((L, 3, DP), jnp.float32)
    scal = jnp.zeros((2 * L,), jnp.float32)
    for i, ((wTi, bi, wgai, wgbi, bgi), beta) in enumerate(zip(layer_params, betas)):
        wT = wT.at[i, :D, :D].set(wTi.astype(jnp.bfloat16))
        bwg = bwg.at[i, 0, :D].set(bi.reshape(-1))
        bwg = bwg.at[i, 1, :D].set(wgai.reshape(-1))
        bwg = bwg.at[i, 2, :D].set(wgbi.reshape(-1))
        scal = scal.at[2 * i].set(float(beta))
        scal = scal.at[2 * i + 1].set(bgi.reshape(()))

    # Explicit VMEM budget: every operand resident exactly once (no double-buffering).
    need = (N * N * 2                 # adj_hat (bf16)
            + 2 * N * DP * 4          # h0 + carried output (f32)
            + L * DP * DP * 2         # stacked W^T (bf16)
            + L * 8 * DP * 4)         # packed bias/gate weights (sublane-padded)
    vmem_limit = max(int(need) + (8 << 20), 32 << 20)
    try:
        phys = int(pltpu.get_tpu_info().vmem_capacity_bytes)
    except Exception:
        phys = 64 << 20               # v7x per-core VMEM (smallest current part)
    vmem_limit = min(vmem_limit, phys)
    # TODO(synk): for graphs where the (N, N) adjacency no longer fits residently, tile the
    # propagation matmul over the contraction dim (stream adjacency blocks from HBM) and/or
    # split rows across TensorCores; unnecessary at these sizes.

    out = pl.pallas_call(
        _air_gcnii_kernel,
        out_shape=jax.ShapeDtypeStruct((N, DP), jnp.float32),
        in_specs=[
            pl.BlockSpec(memory_space=pltpu.MemorySpace.SMEM),   # per-layer scalars
            pl.BlockSpec(memory_space=pltpu.MemorySpace.VMEM),   # adj_hat (resident)
            pl.BlockSpec(memory_space=pltpu.MemorySpace.VMEM),   # h0 (resident)
            pl.BlockSpec(memory_space=pltpu.MemorySpace.VMEM),   # stacked W^T
            pl.BlockSpec(memory_space=pltpu.MemorySpace.VMEM),   # packed bias / gate weights
        ],
        out_specs=pl.BlockSpec(memory_space=pltpu.MemorySpace.VMEM),
        compiler_params=pltpu.CompilerParams(vmem_limit_bytes=int(vmem_limit)),
    )(scal, adj_hat, h0, wT, bwg)
    return out[:, :D]


def air_gcnii_reference(adj_sl, features, layer_params, betas, bf16_matmul=False):
    """Pure-JAX reference of the same forward (f32, or bf16-matmul-matched to the kernel)."""
    cast = (lambda x: x.astype(jnp.bfloat16)) if bf16_matmul else (lambda x: x)
    deg = jnp.clip(jnp.sum(adj_sl, axis=1), 1.0, None)
    norm = deg ** -0.5
    a_hat = adj_sl * norm[:, None] * norm[None, :]
    h0 = features.astype(jnp.float32)
    h = h0
    for (wT, b, wga, wgb, bg), beta in zip(layer_params, betas):
        hp = jnp.dot(cast(a_hat), cast(h), preferred_element_type=jnp.float32)
        logit = jnp.sum(hp * wga.reshape(1, -1) + h0 * wgb.reshape(1, -1),
                        axis=-1, keepdims=True) + bg.reshape(())
        gate = jax.nn.sigmoid(logit)
        hg = h0 + gate * (hp - h0)
        lin = jnp.dot(cast(hg), cast(wT), preferred_element_type=jnp.float32) + b.reshape(1, -1)
        hn = hg + beta * (lin - hg)
        h = jnp.maximum(hn, 0.01 * hn)
    return h


def init_params(key, num_hidden, num_layers):
    """Deterministic parameter init (shapes as implied by the module __init__)."""
    params = []
    D = num_hidden
    for _ in range(num_layers):
        key, k_w, k_wg, k_bg = jax.random.split(key, 4)
        # nn.Linear(D, D): xavier_uniform_(gain=1), bias zeros
        limit = math.sqrt(6.0 / (D + D))
        W = jax.random.uniform(k_w, (D, D), jnp.float32, -limit, limit)   # (out, in)
        wT = W.T                                                          # for h @ W^T
        b = jnp.zeros((1, D), jnp.float32)
        # GatedLayer: nn.Linear(2D, 1) default init; split weight into h / h0 halves
        bound = 1.0 / math.sqrt(2 * D)
        wg = jax.random.uniform(k_wg, (1, 2 * D), jnp.float32, -bound, bound)
        wga = wg[:, :D]
        wgb = wg[:, D:]
        bg = jax.random.uniform(k_bg, (1, 1), jnp.float32, -bound, bound)
        params.append((wT, b, wga, wgb, bg))
    return params


if __name__ == "__main__":
    N = 64          # nodes
    D = 32          # num_hidden
    num_layers = 2
    lambda_ = 0.5

    key = jax.random.PRNGKey(0)
    k_adj, k_feat, k_param = jax.random.split(key, 3)

    # Random undirected graph; remove self-loops and add exactly one self-loop per node
    # (matching remove_self_loop + add_self_loop in the forward pass).
    upper = jax.random.bernoulli(k_adj, 0.15, (N, N)).astype(jnp.float32)
    adj = jnp.clip(upper + upper.T, 0.0, 1.0)
    adj = adj * (1.0 - jnp.eye(N, dtype=jnp.float32)) + jnp.eye(N, dtype=jnp.float32)

    features = jax.random.normal(k_feat, (N, D), jnp.float32)
    layer_params = init_params(k_param, D, num_layers)
    betas = [math.log(lambda_ / (i + 1) + 1.0) for i in range(num_layers)]

    out = air_gcnii_forward(adj, features, layer_params, betas)
    out = jax.block_until_ready(out)

    ref_bf16 = air_gcnii_reference(adj, features, layer_params, betas, bf16_matmul=True)
    ref_f32 = air_gcnii_reference(adj, features, layer_params, betas, bf16_matmul=False)
    assert out.shape == (N, D)
    assert bool(jnp.all(jnp.isfinite(out)))
    # Kernel matches a numerics-matched (bf16-matmul / f32-accumulate) reference tightly...
    assert bool(jnp.allclose(out, ref_bf16, rtol=5e-3, atol=5e-3))
    # ...and the full-f32 reference within the expected bf16-matmul error budget.
    assert bool(jnp.allclose(out, ref_f32, rtol=3e-2, atol=3e-2))
    print("KERNEL_OK")
</pallas_src>

<mosaic_0001>
module attributes {stable_mosaic.version = 11 : i64} {
  func.func @_air_gcnii_kernel(%arg0: memref<4xf32, #tpu.memory_space<smem>>, %arg1: memref<64x64xbf16, #tpu.memory_space<vmem>>, %arg2: memref<64x128xf32, #tpu.memory_space<vmem>>, %arg3: memref<2x128x128xbf16, #tpu.memory_space<vmem>>, %arg4: memref<2x3x128xf32, #tpu.memory_space<vmem>>, %arg5: memref<64x128xf32, #tpu.memory_space<vmem>>) attributes {dimension_semantics = [], scalar_prefetch = 0 : i64, scratch_operands = 0 : i64, tpu.core_type = #tpu.core_type<tc>} {
    %c0 = arith.constant 0 : index
    %c0_0 = arith.constant 0 : index
    %0 = vector.load %arg2[%c0, %c0_0] : memref<64x128xf32, #tpu.memory_space<vmem>>, vector<64x128xf32>
    %c0_1 = arith.constant 0 : index
    %c0_2 = arith.constant 0 : index
    %1 = vector.load %arg5[%c0_1, %c0_2] : memref<64x128xf32, #tpu.memory_space<vmem>>, vector<64x128xf32>
    tpu.vector_store %arg5[%c0_1, %c0_2], %0 {strides = array<i32>} : memref<64x128xf32, #tpu.memory_space<vmem>>, vector<64x128xf32>,
    %c0_3 = arith.constant 0 : index
    %2 = memref.load %arg0[%c0_3] : memref<4xf32, #tpu.memory_space<smem>>
    %c1 = arith.constant 1 : index
    %3 = memref.load %arg0[%c1] : memref<4xf32, #tpu.memory_space<smem>>
    %c0_4 = arith.constant 0 : index
    %c0_5 = arith.constant 0 : index
    %4 = vector.load %arg2[%c0_4, %c0_5] : memref<64x128xf32, #tpu.memory_space<vmem>>, vector<64x128xf32>
    %c0_6 = arith.constant 0 : index
    %c0_7 = arith.constant 0 : index
    %5 = vector.load %arg5[%c0_6, %c0_7] : memref<64x128xf32, #tpu.memory_space<vmem>>, vector<64x128xf32>
    %c0_8 = arith.constant 0 : index
    %c0_9 = arith.constant 0 : index
    %6 = vector.load %arg1[%c0_8, %c0_9] : memref<64x64xbf16, #tpu.memory_space<vmem>>, vector<64x64xbf16>
    %7 = arith.truncf %5 : vector<64x128xf32> to vector<64x128xbf16>
    %cst = arith.constant dense<0.000000e+00> : vector<64x128xf32>
    %8 = tpu.matmul %6, %7, %cst {dimension_numbers = #tpu.dot_dimension_numbers<[1], [0], [0], [1], [0, 0, 1, 1], [], []>} : vector<64x64xbf16>, vector<64x128xbf16>, vector<64x128xf32> -> vector<64x128xf32>
    %c0_10 = arith.constant 0 : index
    %c0_11 = arith.constant 0 : index
    %c0_12 = arith.constant 0 : index
    %9 = vector.load %arg4[%c0_10, %c0_11, %c0_12] : memref<2x3x128xf32, #tpu.memory_space<vmem>>, vector<1x3x128xf32>
    %10 = vector.shape_cast %9 : vector<1x3x128xf32> to vector<3x128xf32>
    %11 = vector.extract_strided_slice %10 {offsets = [0, 0], sizes = [1, 128], strides = [1, 1]} : vector<3x128xf32> to vector<1x128xf32>
    %12 = vector.extract_strided_slice %10 {offsets = [1, 0], sizes = [1, 128], strides = [1, 1]} : vector<3x128xf32> to vector<1x128xf32>
    %13 = vector.extract_strided_slice %10 {offsets = [2, 0], sizes = [1, 128], strides = [1, 1]} : vector<3x128xf32> to vector<1x128xf32>
    %14 = vector.broadcast %12 : vector<1x128xf32> to vector<64x128xf32>
    %15 = arith.mulf %8, %14 : vector<64x128xf32>
    %16 = vector.broadcast %13 : vector<1x128xf32> to vector<64x128xf32>
    %17 = arith.mulf %4, %16 : vector<64x128xf32>
    %18 = arith.addf %15, %17 : vector<64x128xf32>
    %cst_13 = arith.constant dense<0.000000e+00> : vector<64xf32>
    %19 = vector.multi_reduction <add>, %18, %cst_13 [1] : vector<64x128xf32> to vector<64xf32>
    %20 = vector.shape_cast %19 : vector<64xf32> to vector<64x1xf32>
    %21 = vector.broadcast %3 : f32 to vector<64x1xf32>
    %22 = arith.addf %20, %21 : vector<64x1xf32>
    %23 = arith.negf %22 : vector<64x1xf32>
    %24 = math.exp %23 : vector<64x1xf32>
    %cst_14 = arith.constant 1.000000e+00 : f32
    %25 = vector.broadcast %cst_14 : f32 to vector<64x1xf32>
    %26 = arith.addf %25, %24 : vector<64x1xf32>
    %27 = arith.divf %25, %26 : vector<64x1xf32>
    %28 = arith.subf %8, %4 : vector<64x128xf32>
    %29 = vector.broadcast %27 : vector<64x1xf32> to vector<64x128xf32>
    %30 = arith.mulf %29, %28 : vector<64x128xf32>
    %31 = arith.addf %4, %30 : vector<64x128xf32>
    %32 = arith.truncf %31 : vector<64x128xf32> to vector<64x128xbf16>
    %c0_15 = arith.constant 0 : index
    %c0_16 = arith.constant 0 : index
    %c0_17 = arith.constant 0 : index
    %33 = vector.load %arg3[%c0_15, %c0_16, %c0_17] : memref<2x128x128xbf16, #tpu.memory_space<vmem>>, vector<1x128x128xbf16>
    %34 = vector.shape_cast %33 : vector<1x128x128xbf16> to vector<128x128xbf16>
    %cst_18 = arith.constant dense<0.000000e+00> : vector<64x128xf32>
    %35 = tpu.matmul %32, %34, %cst_18 {dimension_numbers = #tpu.dot_dimension_numbers<[1], [0], [0], [1], [0, 0, 1, 1], [], []>} : vector<64x128xbf16>, vector<128x128xbf16>, vector<64x128xf32> -> vector<64x128xf32>
    %36 = vector.broadcast %11 : vector<1x128xf32> to vector<64x128xf32>
    %37 = arith.addf %35, %36 : vector<64x128xf32>
    %38 = arith.subf %37, %31 : vector<64x128xf32>
    %39 = vector.broadcast %2 : f32 to vector<64x128xf32>
    %40 = arith.mulf %39, %38 : vector<64x128xf32>
    %41 = arith.addf %31, %40 : vector<64x128xf32>
    %cst_19 = arith.constant 0.00999999977 : f32
    %42 = vector.broadcast %cst_19 : f32 to vector<64x128xf32>
    %43 = arith.mulf %42, %41 : vector<64x128xf32>
    %44 = arith.maximumf %41, %43 : vector<64x128xf32>
    %c0_20 = arith.constant 0 : index
    %c0_21 = arith.constant 0 : index
    %45 = vector.load %arg5[%c0_20, %c0_21] : memref<64x128xf32, #tpu.memory_space<vmem>>, vector<64x128xf32>
    tpu.vector_store %arg5[%c0_20, %c0_21], %44 {strides = array<i32>} : memref<64x128xf32, #tpu.memory_space<vmem>>, vector<64x128xf32>,
    %c2 = arith.constant 2 : index
    %46 = memref.load %arg0[%c2] : memref<4xf32, #tpu.memory_space<smem>>
    %c3 = arith.constant 3 : index
    %47 = memref.load %arg0[%c3] : memref<4xf32, #tpu.memory_space<smem>>
    %c0_22 = arith.constant 0 : index
    %c0_23 = arith.constant 0 : index
    %48 = vector.load %arg2[%c0_22, %c0_23] : memref<64x128xf32, #tpu.memory_space<vmem>>, vector<64x128xf32>
    %c0_24 = arith.constant 0 : index
    %c0_25 = arith.constant 0 : index
    %49 = vector.load %arg5[%c0_24, %c0_25] : memref<64x128xf32, #tpu.memory_space<vmem>>, vector<64x128xf32>
    %c0_26 = arith.constant 0 : index
    %c0_27 = arith.constant 0 : index
    %50 = vector.load %arg1[%c0_26, %c0_27] : memref<64x64xbf16, #tpu.memory_space<vmem>>, vector<64x64xbf16>
    %51 = arith.truncf %49 : vector<64x128xf32> to vector<64x128xbf16>
    %cst_28 = arith.constant dense<0.000000e+00> : vector<64x128xf32>
    %52 = tpu.matmul %50, %51, %cst_28 {dimension_numbers = #tpu.dot_dimension_numbers<[1], [0], [0], [1], [0, 0, 1, 1], [], []>} : vector<64x64xbf16>, vector<64x128xbf16>, vector<64x128xf32> -> vector<64x128xf32>
    %c1_29 = arith.constant 1 : index
    %c0_30 = arith.constant 0 : index
    %c0_31 = arith.constant 0 : index
    %53 = vector.load %arg4[%c1_29, %c0_30, %c0_31] : memref<2x3x128xf32, #tpu.memory_space<vmem>>, vector<1x3x128xf32>
    %54 = vector.shape_cast %53 : vector<1x3x128xf32> to vector<3x128xf32>
    %55 = vector.extract_strided_slice %54 {offsets = [0, 0], sizes = [1, 128], strides = [1, 1]} : vector<3x128xf32> to vector<1x128xf32>
    %56 = vector.extract_strided_slice %54 {offsets = [1, 0], sizes = [1, 128], strides = [1, 1]} : vector<3x128xf32> to vector<1x128xf32>
    %57 = vector.extract_strided_slice %54 {offsets = [2, 0], sizes = [1, 128], strides = [1, 1]} : vector<3x128xf32> to vector<1x128xf32>
    %58 = vector.broadcast %56 : vector<1x128xf32> to vector<64x128xf32>
    %59 = arith.mulf %52, %58 : vector<64x128xf32>
    %60 = vector.broadcast %57 : vector<1x128xf32> to vector<64x128xf32>
    %61 = arith.mulf %48, %60 : vector<64x128xf32>
    %62 = arith.addf %59, %61 : vector<64x128xf32>
    %cst_32 = arith.constant dense<0.000000e+00> : vector<64xf32>
    %63 = vector.multi_reduction <add>, %62, %cst_32 [1] : vector<64x128xf32> to vector<64xf32>
    %64 = vector.shape_cast %63 : vector<64xf32> to vector<64x1xf32>
    %65 = vector.broadcast %47 : f32 to vector<64x1xf32>
    %66 = arith.addf %64, %65 : vector<64x1xf32>
    %67 = arith.negf %66 : vector<64x1xf32>
    %68 = math.exp %67 : vector<64x1xf32>
    %cst_33 = arith.constant 1.000000e+00 : f32
    %69 = vector.broadcast %cst_33 : f32 to vector<64x1xf32>
    %70 = arith.addf %69, %68 : vector<64x1xf32>
    %71 = arith.divf %69, %70 : vector<64x1xf32>
    %72 = arith.subf %52, %48 : vector<64x128xf32>
    %73 = vector.broadcast %71 : vector<64x1xf32> to vector<64x128xf32>
    %74 = arith.mulf %73, %72 : vector<64x128xf32>
    %75 = arith.addf %48, %74 : vector<64x128xf32>
    %76 = arith.truncf %75 : vector<64x128xf32> to vector<64x128xbf16>
    %c1_34 = arith.constant 1 : index
    %c0_35 = arith.constant 0 : index
    %c0_36 = arith.constant 0 : index
    %77 = vector.load %arg3[%c1_34, %c0_35, %c0_36] : memref<2x128x128xbf16, #tpu.memory_space<vmem>>, vector<1x128x128xbf16>
    %78 = vector.shape_cast %77 : vector<1x128x128xbf16> to vector<128x128xbf16>
    %cst_37 = arith.constant dense<0.000000e+00> : vector<64x128xf32>
    %79 = tpu.matmul %76, %78, %cst_37 {dimension_numbers = #tpu.dot_dimension_numbers<[1], [0], [0], [1], [0, 0, 1, 1], [], []>} : vector<64x128xbf16>, vector<128x128xbf16>, vector<64x128xf32> -> vector<64x128xf32>
    %80 = vector.broadcast %55 : vector<1x128xf32> to vector<64x128xf32>
    %81 = arith.addf %79, %80 : vector<64x128xf32>
    %82 = arith.subf %81, %75 : vector<64x128xf32>
    %83 = vector.broadcast %46 : f32 to vector<64x128xf32>
    %84 = arith.mulf %83, %82 : vector<64x128xf32>
    %85 = arith.addf %75, %84 : vector<64x128xf32>
    %cst_38 = arith.constant 0.00999999977 : f32
    %86 = vector.broadcast %cst_38 : f32 to vector<64x128xf32>
    %87 = arith.mulf %86, %85 : vector<64x128xf32>
    %88 = arith.maximumf %85, %87 : vector<64x128xf32>
    %c0_39 = arith.constant 0 : index
    %c0_40 = arith.constant 0 : index
    %89 = vector.load %arg5[%c0_39, %c0_40] : memref<64x128xf32, #tpu.memory_space<vmem>>, vector<64x128xf32>
    tpu.vector_store %arg5[%c0_39, %c0_40], %88 {strides = array<i32>} : memref<64x128xf32, #tpu.memory_space<vmem>>, vector<64x128xf32>,
    return
  }
}

</mosaic_0001>

<llo_original>
// kernel: tpu_custom_call.1
$region0: #{tpu_custom_call.1}
  #allocation0 [shape = 'u32[]', space=smem, size = 0x4, offset = 0x4, fixed_abs, tag = 'smem constant byte address 0x4 - core index']
  #allocation1 [shape = 'u32[72,128]{1,0:T(1,128)}', space=vmem, size = 0x9000, scoped, tag = 'internal scratch']
  %s0 = inlined_call_operand.vmem [shape: f32[4], index: 0, kind: input, shape index: {}]
  %s1 = inlined_call_operand.hbm [shape: bf16[64,64], index: 1, kind: input, shape index: {}]
  %s2 = inlined_call_operand.hbm [shape: f32[64,128], index: 2, kind: input, shape index: {}]
  %s3 = inlined_call_operand.hbm [shape: bf16[2,128,128], index: 3, kind: input, shape index: {}]
  %s4 = inlined_call_operand.vmem [shape: f32[2,3,128], index: 4, kind: input, shape index: {}]
  %s5 = inlined_call_operand.hbm [shape: f32[64,128], index: 5, kind: output, shape index: {}]
  %s6 = sld [smem:[#allocation0]]
  $region46: #{tpu_custom_call.1} parent=0
    _
  %s8 = ssub.s32 1, %s6
  %s9 = scalar_select 0, %s8, %s6
  $region1: #{tpu_custom_call.1} parent=0
    #allocation2 [shape = 'u8[512]{0}', space=smem, size = 0x200, scoped, tag = 'input window, operand 0, single buffered']
    #allocation3 [shape = 's32[1]{0}', space=sflag, size = 0x4, scoped, tag = 'scoped memory for tpu_custom_call.1']
    #allocation4 [shape = 's32[1]{0}', space=sflag, size = 0x4, scoped, tag = 'scoped memory for tpu_custom_call.1']
    #allocation5 [shape = 's32[1]{0}', space=sflag, size = 0x4, scoped, tag = 'scoped memory for tpu_custom_call.1']
    #allocation6 [shape = 'u8[16384]{0}', space=vmem, size = 0x4000, scoped, tag = 'input window, operand 1, single buffered']
    #allocation7 [shape = 'u8[32768]{0}', space=vmem, size = 0x8000, scoped, tag = 'input window, operand 2, single buffered']
    #allocation8 [shape = 's32[1]{0}', space=sflag, size = 0x4, scoped, tag = 'scoped memory for tpu_custom_call.1']
    #allocation9 [shape = 'u8[65536]{0}', space=vmem, size = 0x10000, scoped, tag = 'input window, operand 3, single buffered']
    #allocation10 [shape = 'u8[32768]{0}', space=vmem, size = 0x8000, scoped, tag = 'output window, operand 0, single buffered']
    %10 = vsyncpa [#allocation5], 0
    %11 = vsyncpa [#allocation3], 0
    %12 = vsyncpa [#allocation8], 0
    %13 = vsyncpa [#allocation4], 0
    // Predicated region
    $region2: #{tpu_custom_call.1} parent=1 // pred_check
      _
    $region3: #{tpu_custom_call.1} parent=1 // pred_check_branch
      %15 = sbr.rel (0) target = $region5
    $region4: #{tpu_custom_call.1} parent=1 // pred_region
      %17 = vsyncadd [#allocation5], 0
      %s19 = sshll.u32 %s0, 4
      %s20 = int_to_ptr.vmem [resolvable:$true] %s19
      %22 = dma.vmem_to_smem %s20, 16, [#allocation2], [#allocation5]
    $region5: #{tpu_custom_call.1} parent=1 // pred_fallthru
      _
    // Predicated region
    $region6: #{tpu_custom_call.1} parent=1 // pred_check
      _
    $region7: #{tpu_custom_call.1} parent=1 // pred_check_branch
      %24 = sbr.rel (0) target = $region9
    $region8: #{tpu_custom_call.1} parent=1 // pred_region
      %26 = vsyncadd [#allocation3], 0
      %s27 = sshll.u32 %s1, 4
      %s28 = int_to_ptr.hbm [resolvable:$true] %s27
      %s29 = sshll.u32 [#allocation6], 4
      %s30 = int_to_ptr.vmem [resolvable:$true] %s29
      %35 = dma.hbm_to_vmem [thread:$0]  %s28, 512, %s30, [#allocation3], 64, 64, 4
    $region9: #{tpu_custom_call.1} parent=1 // pred_fallthru
      _
    // Predicated region
    $region10: #{tpu_custom_call.1} parent=1 // pred_check
      _
    $region11: #{tpu_custom_call.1} parent=1 // pred_check_branch
      %37 = sbr.rel (0) target = $region13
    $region12: #{tpu_custom_call.1} parent=1 // pred_region
      %39 = vsyncadd [#allocation8], 0
      %s40 = sshll.u32 %s2, 4
      %s41 = int_to_ptr.hbm [resolvable:$true] %s40
      %s42 = sshll.u32 [#allocation7], 4
      %s43 = int_to_ptr.vmem [resolvable:$true] %s42
      %48 = dma.hbm_to_vmem [thread:$0]  %s41, 1024, %s43, [#allocation8], 128, 128, 8
    $region13: #{tpu_custom_call.1} parent=1 // pred_fallthru
      _
    // Predicated region
    $region14: #{tpu_custom_call.1} parent=1 // pred_check
      _
    $region15: #{tpu_custom_call.1} parent=1 // pred_check_branch
      %50 = sbr.rel (0) target = $region17
    $region16: #{tpu_custom_call.1} parent=1 // pred_region
      %52 = vsyncadd [#allocation8], 0
      %s53 = sshll.u32 %s3, 4
      %s54 = int_to_ptr.hbm [resolvable:$true] %s53
      %s55 = sshll.u32 [#allocation9], 4
      %s56 = int_to_ptr.vmem [resolvable:$true] %s55
      %61 = dma.hbm_to_vmem [thread:$0]  %s54, 2048, %s56, [#allocation8], 64, 64, 4
    $region17: #{tpu_custom_call.1} parent=1 // pred_fallthru
      _
    // Predicated region
    $region18: #{tpu_custom_call.1} parent=1 // pred_check
      _
    $region19: #{tpu_custom_call.1} parent=1 // pred_check_branch
      %63 = sbr.rel (0) target = $region21
    $region20: #{tpu_custom_call.1} parent=1 // pred_region
      _
    $region21: #{tpu_custom_call.1} parent=1 // pred_fallthru
      _
    // Predicated region
    $region22: #{tpu_custom_call.1} parent=1 // pred_check
      _
    $region23: #{tpu_custom_call.1} parent=1 // pred_check_branch
      %65 = sbr.rel (0) target = $region25
    $region24: #{tpu_custom_call.1} parent=1 // pred_region
      %67 = dma.done [#allocation5], 16
    $region25: #{tpu_custom_call.1} parent=1 // pred_fallthru
      _
    // Predicated region
    $region26: #{tpu_custom_call.1} parent=1 // pred_check
      _
    $region27: #{tpu_custom_call.1} parent=1 // pred_check_branch
      %69 = sbr.rel (0) target = $region29
    $region28: #{tpu_custom_call.1} parent=1 // pred_region
      %71 = dma.done [#allocation3], 512
    $region29: #{tpu_custom_call.1} parent=1 // pred_fallthru
      _
    // Predicated region
    $region30: #{tpu_custom_call.1} parent=1 // pred_check
      _
    $region31: #{tpu_custom_call.1} parent=1 // pred_check_branch
      %73 = sbr.rel (0) target = $region33
    $region32: #{tpu_custom_call.1} parent=1 // pred_region
      %75 = dma.done [#allocation8], 1024
    $region33: #{tpu_custom_call.1} parent=1 // pred_fallthru
      _
    // Predicated region
    $region34: #{tpu_custom_call.1} parent=1 // pred_check
      _
    $region35: #{tpu_custom_call.1} parent=1 // pred_check_branch
      %77 = sbr.rel (0) target = $region37
    $region36: #{tpu_custom_call.1} parent=1 // pred_region
      %79 = dma.done [#allocation8], 2048
    $region37: #{tpu_custom_call.1} parent=1 // pred_fallthru
      _
    %80 = sfence
    %v82 = vld [vmem:[#allocation7] sm:$0xff]
    %v83 = vld [vmem:[#allocation7 + $0x8] sm:$0xff]
    %v84 = vld [vmem:[#allocation7 + $0x10] sm:$0xff]
    %v85 = vld [vmem:[#allocation7 + $0x18] sm:$0xff]
    %v86 = vld [vmem:[#allocation7 + $0x20] sm:$0xff]
    %v87 = vld [vmem:[#allocation7 + $0x28] sm:$0xff]
    %v88 = vld [vmem:[#allocation7 + $0x30] sm:$0xff]
    %v89 = vld [vmem:[#allocation7 + $0x38] sm:$0xff]
    %90 = vst [vmem:[#allocation10] sm:$0xff] %v82
    %91 = vst [vmem:[#allocation10 + $0x8] sm:$0xff] %v83
    %92 = vst [vmem:[#allocation10 + $0x10] sm:$0xff] %v84
    %93 = vst [vmem:[#allocation10 + $0x18] sm:$0xff] %v85
    %94 = vst [vmem:[#allocation10 + $0x20] sm:$0xff] %v86
    %95 = vst [vmem:[#allocation10 + $0x28] sm:$0xff] %v87
    %96 = vst [vmem:[#allocation10 + $0x30] sm:$0xff] %v88
    %97 = vst [vmem:[#allocation10 + $0x38] sm:$0xff] %v89
    %s98 = sld [smem:[#allocation2]]
    %s99 = sld [smem:[#allocation2 + $0x1]]
    %v100 = vld [vmem:[#allocation7] sm:$0xff]
    %v101 = vld [vmem:[#allocation7 + $0x8] sm:$0xff]
    %v102 = vld [vmem:[#allocation7 + $0x10] sm:$0xff]
    %v103 = vld [vmem:[#allocation7 + $0x18] sm:$0xff]
    %v104 = vld [vmem:[#allocation7 + $0x20] sm:$0xff]
    %v105 = vld [vmem:[#allocation7 + $0x28] sm:$0xff]
    %v106 = vld [vmem:[#allocation7 + $0x30] sm:$0xff]
    %v107 = vld [vmem:[#allocation7 + $0x38] sm:$0xff]
    %v108 = vld [vmem:[#allocation10] sm:$0xff]
    %v109 = vld [vmem:[#allocation10 + $0x8] sm:$0xff]
    %v110 = vld [vmem:[#allocation10 + $0x10] sm:$0xff]
    %v111 = vld [vmem:[#allocation10 + $0x18] sm:$0xff]
    %v112 = vld [vmem:[#allocation10 + $0x20] sm:$0xff]
    %v113 = vld [vmem:[#allocation10 + $0x28] sm:$0xff]
    %v114 = vld [vmem:[#allocation10 + $0x30] sm:$0xff]
    %v115 = vld [vmem:[#allocation10 + $0x38] sm:$0xff]
    %v116 = vld [vmem:[#allocation6] sm:$0xf]
    %v117 = vld [vmem:[#allocation6 + $0x4] sm:$0xf]
    %v118 = vld [vmem:[#allocation6 + $0x8] sm:$0xf]
    %v119 = vld [vmem:[#allocation6 + $0xc] sm:$0xf]
    %v120 = vld [vmem:[#allocation6 + $0x10] sm:$0xf]
    %v121 = vld [vmem:[#allocation6 + $0x14] sm:$0xf]
    %v122 = vld [vmem:[#allocation6 + $0x18] sm:$0xf]
    %v123 = vld [vmem:[#allocation6 + $0x1c] sm:$0xf]
    %v124 = vpack.c.bf16 %v109, %v108
    %v125 = vpack.c.bf16 %v111, %v110
    %v126 = vpack.c.bf16 %v113, %v112
    %v127 = vpack.c.bf16 %v115, %v114
    %v136 = vunpack.c.l.b16 %v116
    %v137 = vunpack.c.l.b16 %v117
    %v138 = vunpack.c.l.b16 %v118
    %v139 = vunpack.c.l.b16 %v119
    %v140 = vunpack.c.l.b16 %v120
    %v141 = vunpack.c.l.b16 %v121
    %v142 = vunpack.c.l.b16 %v122
    %v143 = vunpack.c.l.b16 %v123
    %v144 = vpack.c.b16 %v137, %v136
    %v145 = vpack.c.b16 %v139, %v138
    %v146 = vpack.c.b16 %v141, %v140
    %v147 = vpack.c.b16 %v143, %v142
    %vm148 = vcmask 523264
    %v150 = vsel %vm148, %v144, 0
    %v153 = vsel %vm148, %v145, 0
    %v156 = vsel %vm148, %v146, 0
    %v159 = vsel %vm148, %v147, 0
    %161 = vmatpush.bf16.msra.mxu0 0
    %162 = vmatpush.bf16.msra.mxu0 0
    %163 = vmatpush.bf16.msra.mxu0 0
    %164 = vmatpush.bf16.msra.mxu0 0
    %165 = vmatpush.bf16.msra.mxu0 %v127
    %166 = vmatpush.bf16.msra.mxu0 %v126
    %167 = vmatpush.bf16.msra.mxu0 %v125
    %168 = vmatpush.bf16.msra.mxu0 %v124
    %169 = vmatmul.bf16.gmra.mxu0 %v150
    %v170 = vpop.f32.mrf.mxu0
    %v171 = vadd.f32 0.0, %v170
    %v172 = vpop.f32.mrf.mxu0
    %v173 = vadd.f32 0.0, %v172
    %174 = vmatmul.bf16.gmra.mxu0 %v153
    %v175 = vpop.f32.mrf.mxu0
    %v176 = vadd.f32 0.0, %v175
    %v177 = vpop.f32.mrf.mxu0
    %v178 = vadd.f32 0.0, %v177
    %179 = vmatmul.bf16.gmra.mxu0 %v156
    %v180 = vpop.f32.mrf.mxu0
    %v181 = vadd.f32 0.0, %v180
    %v182 = vpop.f32.mrf.mxu0
    %v183 = vadd.f32 0.0, %v182
    %184 = vmatmul.bf16.gmra.mxu0 %v159
    %v185 = vpop.f32.mrf.mxu0
    %v186 = vadd.f32 0.0, %v185
    %v187 = vpop.f32.mrf.mxu0
    %v188 = vadd.f32 0.0, %v187
    %189 = vdwg.mxu0
    %v190 = vld [vmem:[%s4] sm:$0x7]
    %v191 = vperm.slane %v190, 1
    %v192 = vmul.f32 %v171, %v191
    %v193 = vmul.f32 %v173, %v191
    %v194 = vmul.f32 %v176, %v191
    %v195 = vmul.f32 %v178, %v191
    %v196 = vmul.f32 %v181, %v191
    %v197 = vmul.f32 %v183, %v191
    %v198 = vmul.f32 %v186, %v191
    %v199 = vmul.f32 %v188, %v191
    %v200 = vperm.slane %v190, 2
    %v201 = vmul.f32 %v100, %v200
    %v202 = vmul.f32 %v101, %v200
    %v203 = vmul.f32 %v102, %v200
    %v204 = vmul.f32 %v103, %v200
    %v205 = vmul.f32 %v104, %v200
    %v206 = vmul.f32 %v105, %v200
    %v207 = vmul.f32 %v106, %v200
    %v208 = vmul.f32 %v107, %v200
    %v209 = vadd.f32 %v192, %v201
    %v210 = vadd.f32 %v193, %v202
    %v211 = vadd.f32 %v194, %v203
    %v212 = vadd.f32 %v195, %v204
    %v213 = vadd.f32 %v196, %v205
    %v214 = vadd.f32 %v197, %v206
    %v215 = vadd.f32 %v198, %v207
    %v216 = vadd.f32 %v199, %v208
    %217 = vadd.xlane.f32.xlu0 %v209
    %v218 = vpop.xlane.xlu0 %217
    %219 = vadd.xlane.f32.xlu0 %v210
    %v220 = vpop.xlane.xlu0 %219
    %221 = vadd.xlane.f32.xlu0 %v211
    %v222 = vpop.xlane.xlu0 %221
    %223 = vadd.xlane.f32.xlu0 %v212
    %v224 = vpop.xlane.xlu0 %223
    %225 = vadd.xlane.f32.xlu0 %v213
    %v226 = vpop.xlane.xlu0 %225
    %227 = vadd.xlane.f32.xlu0 %v214
    %v228 = vpop.xlane.xlu0 %227
    %229 = vadd.xlane.f32.xlu0 %v215
    %v230 = vpop.xlane.xlu0 %229
    %231 = vadd.xlane.f32.xlu0 %v216
    %v232 = vpop.xlane.xlu0 %231
    %v233 = vstv %s99
    %v234 = vadd.f32 %v218, %v233
    %v235 = vadd.f32 %v220, %v233
    %v236 = vadd.f32 %v222, %v233
    %v237 = vadd.f32 %v224, %v233
    %v238 = vadd.f32 %v226, %v233
    %v239 = vadd.f32 %v228, %v233
    %v240 = vadd.f32 %v230, %v233
    %v241 = vadd.f32 %v232, %v233
    %v242 = vxor.u32 %v234, 2147483648
    %v243 = vxor.u32 %v235, 2147483648
    %v244 = vxor.u32 %v236, 2147483648
    %v245 = vxor.u32 %v237, 2147483648
    %v246 = vxor.u32 %v238, 2147483648
    %v247 = vxor.u32 %v239, 2147483648
    %v248 = vxor.u32 %v240, 2147483648
    %v249 = vxor.u32 %v241, 2147483648
    %v250 = vmul.f32 %v242, 1.442695
    %v251 = vpow.pop %v250
    %v252 = vmul.f32 %v243, 1.442695
    %v253 = vpow.pop %v252
    %v254 = vmul.f32 %v244, 1.442695
    %v255 = vpow.pop %v254
    %v256 = vmul.f32 %v245, 1.442695
    %v257 = vpow.pop %v256
    %v258 = vmul.f32 %v246, 1.442695
    %v259 = vpow.pop %v258
    %v260 = vmul.f32 %v247, 1.442695
    %v261 = vpow.pop %v260
    %v262 = vmul.f32 %v248, 1.442695
    %v263 = vpow.pop %v262
    %v264 = vmul.f32 %v249, 1.442695
    %v265 = vpow.pop %v264
    %v266 = vadd.f32 %v251, 1.0
    %v267 = vadd.f32 %v253, 1.0
    %v268 = vadd.f32 %v255, 1.0
    %v269 = vadd.f32 %v257, 1.0
    %v270 = vadd.f32 %v259, 1.0
    %v271 = vadd.f32 %v261, 1.0
    %v272 = vadd.f32 %v263, 1.0
    %v273 = vadd.f32 %v265, 1.0
    %v274 = vrcp.pop %v266
    %v275 = vmul.f32 %v266, %v274
    %v276 = vsub.f32 1.0, %v275
    %v277 = vmul.f32 %v274, %v276
    %v278 = vadd.f32 %v274, %v277
    %vm279 = vweird.f32 %v266
    %vm280 = vweird.f32 %v274
    %vm281 = vmor %vm279, %vm280
    %v282 = vsel %vm281, %v274, %v278
    %v283 = vand.u32 2147483647, %v266
    %vm284 = vcmp.eq.f32.partialorder %v283, 8.507059e+37
    %v285 = vand.u32 %v266, 2147483648
    %v286 = vor.u32 1.1754944e-38, %v285
    %v287 = vsel %vm284, %v286, %v282
    %v288 = vmul.f32 1.0, %v287
    %v289 = vrcp.pop %v267
    %v290 = vmul.f32 %v267, %v289
    %v291 = vsub.f32 1.0, %v290
    %v292 = vmul.f32 %v289, %v291
    %v293 = vadd.f32 %v289, %v292
    %vm294 = vweird.f32 %v267
    %vm295 = vweird.f32 %v289
    %vm296 = vmor %vm294, %vm295
    %v297 = vsel %vm296, %v289, %v293
    %v298 = vand.u32 2147483647, %v267
    %vm299 = vcmp.eq.f32.partialorder %v298, 8.507059e+37
    %v300 = vand.u32 %v267, 2147483648
    %v301 = vor.u32 1.1754944e-38, %v300
    %v302 = vsel %vm299, %v301, %v297
    %v303 = vmul.f32 1.0, %v302
    %v304 = vrcp.pop %v268
    %v305 = vmul.f32 %v268, %v304
    %v306 = vsub.f32 1.0, %v305
    %v307 = vmul.f32 %v304, %v306
    %v308 = vadd.f32 %v304, %v307
    %vm309 = vweird.f32 %v268
    %vm310 = vweird.f32 %v304
    %vm311 = vmor %vm309, %vm310
    %v312 = vsel %vm311, %v304, %v308
    %v313 = vand.u32 2147483647, %v268
    %vm314 = vcmp.eq.f32.partialorder %v313, 8.507059e+37
    %v315 = vand.u32 %v268, 2147483648
    %v316 = vor.u32 1.1754944e-38, %v315
    %v317 = vsel %vm314, %v316, %v312
    %v318 = vmul.f32 1.0, %v317
    %v319 = vrcp.pop %v269
    %v320 = vmul.f32 %v269, %v319
    %v321 = vsub.f32 1.0, %v320
    %v322 = vmul.f32 %v319, %v321
    %v323 = vadd.f32 %v319, %v322
    %vm324 = vweird.f32 %v269
    %vm325 = vweird.f32 %v319
    %vm326 = vmor %vm324, %vm325
    %v327 = vsel %vm326, %v319, %v323
    %v328 = vand.u32 2147483647, %v269
    %vm329 = vcmp.eq.f32.partialorder %v328, 8.507059e+37
    %v330 = vand.u32 %v269, 2147483648
    %v331 = vor.u32 1.1754944e-38, %v330
    %v332 = vsel %vm329, %v331, %v327
    %v333 = vmul.f32 1.0, %v332
    %v334 = vrcp.pop %v270
    %v335 = vmul.f32 %v270, %v334
    %v336 = vsub.f32 1.0, %v335
    %v337 = vmul.f32 %v334, %v336
    %v338 = vadd.f32 %v334, %v337
    %vm339 = vweird.f32 %v270
    %vm340 = vweird.f32 %v334
    %vm341 = vmor %vm339, %vm340
    %v342 = vsel %vm341, %v334, %v338
    %v343 = vand.u32 2147483647, %v270
    %vm344 = vcmp.eq.f32.partialorder %v343, 8.507059e+37
    %v345 = vand.u32 %v270, 2147483648
    %v346 = vor.u32 1.1754944e-38, %v345
    %v347 = vsel %vm344, %v346, %v342
    %v348 = vmul.f32 1.0, %v347
    %v349 = vrcp.pop %v271
    %v350 = vmul.f32 %v271, %v349
    %v351 = vsub.f32 1.0, %v350
    %v352 = vmul.f32 %v349, %v351
    %v353 = vadd.f32 %v349, %v352
    %vm354 = vweird.f32 %v271
    %vm355 = vweird.f32 %v349
    %vm356 = vmor %vm354, %vm355
    %v357 = vsel %vm356, %v349, %v353
    %v358 = vand.u32 2147483647, %v271
    %vm359 = vcmp.eq.f32.partialorder %v358, 8.507059e+37
    %v360 = vand.u32 %v271, 2147483648
    %v361 = vor.u32 1.1754944e-38, %v360
    %v362 = vsel %vm359, %v361, %v357
    %v363 = vmul.f32 1.0, %v362
    %v364 = vrcp.pop %v272
    %v365 = vmul.f32 %v272, %v364
    %v366 = vsub.f32 1.0, %v365
    %v367 = vmul.f32 %v364, %v366
    %v368 = vadd.f32 %v364, %v367
    %vm369 = vweird.f32 %v272
    %vm370 = vweird.f32 %v364
    %vm371 = vmor %vm369, %vm370
    %v372 = vsel %vm371, %v364, %v368
    %v373 = vand.u32 2147483647, %v272
    %vm374 = vcmp.eq.f32.partialorder %v373, 8.507059e+37
    %v375 = vand.u32 %v272, 2147483648
    %v376 = vor.u32 1.1754944e-38, %v375
    %v377 = vsel %vm374, %v376, %v372
    %v378 = vmul.f32 1.0, %v377
    %v379 = vrcp.pop %v273
    %v380 = vmul.f32 %v273, %v379
    %v381 = vsub.f32 1.0, %v380
    %v382 = vmul.f32 %v379, %v381
    %v383 = vadd.f32 %v379, %v382
    %vm384 = vweird.f32 %v273
    %vm385 = vweird.f32 %v379
    %vm386 = vmor %vm384, %vm385
    %v387 = vsel %vm386, %v379, %v383
    %v388 = vand.u32 2147483647, %v273
    %vm389 = vcmp.eq.f32.partialorder %v388, 8.507059e+37
    %v390 = vand.u32 %v273, 2147483648
    %v391 = vor.u32 1.1754944e-38, %v390
    %v392 = vsel %vm389, %v391, %v387
    %v393 = vmul.f32 1.0, %v392
    %v394 = vsub.f32 %v171, %v100
    %v395 = vsub.f32 %v173, %v101
    %v396 = vsub.f32 %v176, %v102
    %v397 = vsub.f32 %v178, %v103
    %v398 = vsub.f32 %v181, %v104
    %v399 = vsub.f32 %v183, %v105
    %v400 = vsub.f32 %v186, %v106
    %v401 = vsub.f32 %v188, %v107
    %v402 = vmul.f32 %v288, %v394
    %v403 = vmul.f32 %v303, %v395
    %v404 = vmul.f32 %v318, %v396
    %v405 = vmul.f32 %v333, %v397
    %v406 = vmul.f32 %v348, %v398
    %v407 = vmul.f32 %v363, %v399
    %v408 = vmul.f32 %v378, %v400
    %v409 = vmul.f32 %v393, %v401
    %v410 = vadd.f32 %v100, %v402
    %v411 = vadd.f32 %v101, %v403
    %v412 = vadd.f32 %v102, %v404
    %v413 = vadd.f32 %v103, %v405
    %v414 = vadd.f32 %v104, %v406
    %v415 = vadd.f32 %v105, %v407
    %v416 = vadd.f32 %v106, %v408
    %v417 = vadd.f32 %v107, %v409
    %v418 = vpack.c.bf16 %v411, %v410
    %v419 = vpack.c.bf16 %v413, %v412
    %v420 = vpack.c.bf16 %v415, %v414
    %v421 = vpack.c.bf16 %v417, %v416
    %v422 = vld [vmem:[#allocation9] sm:$0xf]
    %v423 = vld [vmem:[#allocation9 + $0x4] sm:$0xf]
    %v424 = vld [vmem:[#allocation9 + $0x8] sm:$0xf]
    %v425 = vld [vmem:[#allocation9 + $0xc] sm:$0xf]
    %v426 = vld [vmem:[#allocation9 + $0x10] sm:$0xf]
    %v427 = vld [vmem:[#allocation9 + $0x14] sm:$0xf]
    %v428 = vld [vmem:[#allocation9 + $0x18] sm:$0xf]
    %v429 = vld [vmem:[#allocation9 + $0x1c] sm:$0xf]
    %v430 = vld [vmem:[#allocation9 + $0x20] sm:$0xf]
    %v431 = vld [vmem:[#allocation9 + $0x24] sm:$0xf]
    %v432 = vld [vmem:[#allocation9 + $0x28] sm:$0xf]
    %v433 = vld [vmem:[#allocation9 + $0x2c] sm:$0xf]
    %v434 = vld [vmem:[#allocation9 + $0x30] sm:$0xf]
    %v435 = vld [vmem:[#allocation9 + $0x34] sm:$0xf]
    %v436 = vld [vmem:[#allocation9 + $0x38] sm:$0xf]
    %v437 = vld [vmem:[#allocation9 + $0x3c] sm:$0xf]
    %v438 = vperm.slane %v190, 0
    %v455 = vunpack.c.l.b16 %v422
    %v456 = vunpack.c.l.b16 %v423
    %v457 = vunpack.c.l.b16 %v424
    %v458 = vunpack.c.l.b16 %v425
    %v459 = vunpack.c.l.b16 %v426
    %v460 = vunpack.c.l.b16 %v427
    %v461 = vunpack.c.l.b16 %v428
    %v462 = vunpack.c.l.b16 %v429
    %v463 = vunpack.c.l.b16 %v430
    %v464 = vunpack.c.l.b16 %v431
    %v465 = vunpack.c.l.b16 %v432
    %v466 = vunpack.c.l.b16 %v433
    %v467 = vunpack.c.l.b16 %v434
    %v468 = vunpack.c.l.b16 %v435
    %v469 = vunpack.c.l.b16 %v436
    %v470 = vunpack.c.l.b16 %v437
    %v471 = vpack.c.b16 %v456, %v455
    %v472 = vpack.c.b16 %v458, %v457
    %v473 = vpack.c.b16 %v460, %v459
    %v474 = vpack.c.b16 %v462, %v461
    %v475 = vpack.c.b16 %v464, %v463
    %v476 = vpack.c.b16 %v466, %v465
    %v477 = vpack.c.b16 %v468, %v467
    %v478 = vpack.c.b16 %v470, %v469
    %487 = vmatpush.bf16.msra.mxu0 %v478
    %488 = vmatpush.bf16.msra.mxu0 %v477
    %489 = vmatpush.bf16.msra.mxu0 %v476
    %490 = vmatpush.bf16.msra.mxu0 %v475
    %491 = vmatpush.bf16.msra.mxu0 %v474
    %492 = vmatpush.bf16.msra.mxu0 %v473
    %493 = vmatpush.bf16.msra.mxu0 %v472
    %494 = vmatpush.bf16.msra.mxu0 %v471
    %495 = vmatmul.bf16.gmra.mxu0 %v418
    %v496 = vpop.f32.mrf.mxu0
    %v497 = vadd.f32 %v438, %v496
    %v498 = vpop.f32.mrf.mxu0
    %v499 = vadd.f32 %v438, %v498
    %500 = vmatmul.bf16.gmra.mxu0 %v419
    %v501 = vpop.f32.mrf.mxu0
    %v502 = vadd.f32 %v438, %v501
    %v503 = vpop.f32.mrf.mxu0
    %v504 = vadd.f32 %v438, %v503
    %505 = vmatmul.bf16.gmra.mxu0 %v420
    %v506 = vpop.f32.mrf.mxu0
    %v507 = vadd.f32 %v438, %v506
    %v508 = vpop.f32.mrf.mxu0
    %v509 = vadd.f32 %v438, %v508
    %510 = vmatmul.bf16.gmra.mxu0 %v421
    %v511 = vpop.f32.mrf.mxu0
    %v512 = vadd.f32 %v438, %v511
    %v513 = vpop.f32.mrf.mxu0
    %v514 = vadd.f32 %v438, %v513
    %515 = vdwg.mxu0
    %v516 = vsub.f32 %v497, %v410
    %v517 = vsub.f32 %v499, %v411
    %v518 = vsub.f32 %v502, %v412
    %v519 = vsub.f32 %v504, %v413
    %v520 = vsub.f32 %v507, %v414
    %v521 = vsub.f32 %v509, %v415
    %v522 = vsub.f32 %v512, %v416
    %v523 = vsub.f32 %v514, %v417
    %v524 = vstv %s98
    %v525 = vmul.f32 %v524, %v516
    %v526 = vmul.f32 %v524, %v517
    %v527 = vmul.f32 %v524, %v518
    %v528 = vmul.f32 %v524, %v519
    %v529 = vmul.f32 %v524, %v520
    %v530 = vmul.f32 %v524, %v521
    %v531 = vmul.f32 %v524, %v522
    %v532 = vmul.f32 %v524, %v523
    %v533 = vadd.f32 %v410, %v525
    %v534 = vadd.f32 %v411, %v526
    %v535 = vadd.f32 %v412, %v527
    %v536 = vadd.f32 %v413, %v528
    %v537 = vadd.f32 %v414, %v529
    %v538 = vadd.f32 %v415, %v530
    %v539 = vadd.f32 %v416, %v531
    %v540 = vadd.f32 %v417, %v532
    %v541 = vmul.f32 %v533, 0.01
    %v542 = vmul.f32 %v534, 0.01
    %v543 = vmul.f32 %v535, 0.01
    %v544 = vmul.f32 %v536, 0.01
    %v545 = vmul.f32 %v537, 0.01
    %v546 = vmul.f32 %v538, 0.01
    %v547 = vmul.f32 %v539, 0.01
    %v548 = vmul.f32 %v540, 0.01
    %v549 = vmax.f32 %v533, %v541
    %v550 = vmax.f32 %v534, %v542
    %v551 = vmax.f32 %v535, %v543
    %v552 = vmax.f32 %v536, %v544
    %v553 = vmax.f32 %v537, %v545
    %v554 = vmax.f32 %v538, %v546
    %v555 = vmax.f32 %v539, %v547
    %v556 = vmax.f32 %v540, %v548
    %557 = vst [vmem:[#allocation10] sm:$0xff] %v549
    %558 = vst [vmem:[#allocation10 + $0x8] sm:$0xff] %v550
    %559 = vst [vmem:[#allocation10 + $0x10] sm:$0xff] %v551
    %560 = vst [vmem:[#allocation10 + $0x18] sm:$0xff] %v552
    %561 = vst [vmem:[#allocation10 + $0x20] sm:$0xff] %v553
    %562 = vst [vmem:[#allocation10 + $0x28] sm:$0xff] %v554
    %563 = vst [vmem:[#allocation10 + $0x30] sm:$0xff] %v555
    %564 = vst [vmem:[#allocation10 + $0x38] sm:$0xff] %v556
    %s565 = sld [smem:[#allocation2 + $0x2]]
    %s566 = sld [smem:[#allocation2 + $0x3]]
    %v567 = vld [vmem:[#allocation7] sm:$0xff]
    %v568 = vld [vmem:[#allocation7 + $0x8] sm:$0xff]
    %v569 = vld [vmem:[#allocation7 + $0x10] sm:$0xff]
    %v570 = vld [vmem:[#allocation7 + $0x18] sm:$0xff]
    %v571 = vld [vmem:[#allocation7 + $0x20] sm:$0xff]
    %v572 = vld [vmem:[#allocation7 + $0x28] sm:$0xff]
    %v573 = vld [vmem:[#allocation7 + $0x30] sm:$0xff]
    %v574 = vld [vmem:[#allocation7 + $0x38] sm:$0xff]
    %v575 = vld [vmem:[#allocation10] sm:$0xff]
    %v576 = vld [vmem:[#allocation10 + $0x8] sm:$0xff]
    %v577 = vld [vmem:[#allocation10 + $0x10] sm:$0xff]
    %v578 = vld [vmem:[#allocation10 + $0x18] sm:$0xff]
    %v579 = vld [vmem:[#allocation10 + $0x20] sm:$0xff]
    %v580 = vld [vmem:[#allocation10 + $0x28] sm:$0xff]
    %v581 = vld [vmem:[#allocation10 + $0x30] sm:$0xff]
    %v582 = vld [vmem:[#allocation10 + $0x38] sm:$0xff]
    %v583 = vld [vmem:[#allocation6] sm:$0xf]
    %v584 = vld [vmem:[#allocation6 + $0x4] sm:$0xf]
    %v585 = vld [vmem:[#allocation6 + $0x8] sm:$0xf]
    %v586 = vld [vmem:[#allocation6 + $0xc] sm:$0xf]
    %v587 = vld [vmem:[#allocation6 + $0x10] sm:$0xf]
    %v588 = vld [vmem:[#allocation6 + $0x14] sm:$0xf]
    %v589 = vld [vmem:[#allocation6 + $0x18] sm:$0xf]
    %v590 = vld [vmem:[#allocation6 + $0x1c] sm:$0xf]
    %v591 = vpack.c.bf16 %v576, %v575
    %v592 = vpack.c.bf16 %v578, %v577
    %v593 = vpack.c.bf16 %v580, %v579
    %v594 = vpack.c.bf16 %v582, %v581
    %v603 = vunpack.c.l.b16 %v583
    %v604 = vunpack.c.l.b16 %v584
    %v605 = vunpack.c.l.b16 %v585
    %v606 = vunpack.c.l.b16 %v586
    %v607 = vunpack.c.l.b16 %v587
    %v608 = vunpack.c.l.b16 %v588
    %v609 = vunpack.c.l.b16 %v589
    %v610 = vunpack.c.l.b16 %v590
    %v611 = vpack.c.b16 %v604, %v603
    %v612 = vpack.c.b16 %v606, %v605
    %v613 = vpack.c.b16 %v608, %v607
    %v614 = vpack.c.b16 %v610, %v609
    %v616 = vsel %vm148, %v611, 0
    %v619 = vsel %vm148, %v612, 0
    %v622 = vsel %vm148, %v613, 0
    %v625 = vsel %vm148, %v614, 0
    %627 = vmatpush.bf16.msra.mxu0 0
    %628 = vmatpush.bf16.msra.mxu0 0
    %629 = vmatpush.bf16.msra.mxu0 0
    %630 = vmatpush.bf16.msra.mxu0 0
    %631 = vmatpush.bf16.msra.mxu0 %v594
    %632 = vmatpush.bf16.msra.mxu0 %v593
    %633 = vmatpush.bf16.msra.mxu0 %v592
    %634 = vmatpush.bf16.msra.mxu0 %v591
    %635 = vmatmul.bf16.gmra.mxu0 %v616
    %v636 = vpop.f32.mrf.mxu0
    %v637 = vadd.f32 0.0, %v636
    %v638 = vpop.f32.mrf.mxu0
    %v639 = vadd.f32 0.0, %v638
    %640 = vmatmul.bf16.gmra.mxu0 %v619
    %v641 = vpop.f32.mrf.mxu0
    %v642 = vadd.f32 0.0, %v641
    %v643 = vpop.f32.mrf.mxu0
    %v644 = vadd.f32 0.0, %v643
    %645 = vmatmul.bf16.gmra.mxu0 %v622
    %v646 = vpop.f32.mrf.mxu0
    %v647 = vadd.f32 0.0, %v646
    %v648 = vpop.f32.mrf.mxu0
    %v649 = vadd.f32 0.0, %v648
    %650 = vmatmul.bf16.gmra.mxu0 %v625
    %v651 = vpop.f32.mrf.mxu0
    %v652 = vadd.f32 0.0, %v651
    %v653 = vpop.f32.mrf.mxu0
    %v654 = vadd.f32 0.0, %v653
    %655 = vdwg.mxu0
    %s656 = scalar_lea.vmem %s4, 4
    %v657 = vld [vmem:[%s656] sm:$0x7]
    %v658 = vperm.slane %v657, 1
    %v659 = vmul.f32 %v637, %v658
    %v660 = vmul.f32 %v639, %v658
    %v661 = vmul.f32 %v642, %v658
    %v662 = vmul.f32 %v644, %v658
    %v663 = vmul.f32 %v647, %v658
    %v664 = vmul.f32 %v649, %v658
    %v665 = vmul.f32 %v652, %v658
    %v666 = vmul.f32 %v654, %v658
    %v667 = vperm.slane %v657, 2
    %v668 = vmul.f32 %v567, %v667
    %v669 = vmul.f32 %v568, %v667
    %v670 = vmul.f32 %v569, %v667
    %v671 = vmul.f32 %v570, %v667
    %v672 = vmul.f32 %v571, %v667
    %v673 = vmul.f32 %v572, %v667
    %v674 = vmul.f32 %v573, %v667
    %v675 = vmul.f32 %v574, %v667
    %v676 = vadd.f32 %v659, %v668
    %v677 = vadd.f32 %v660, %v669
    %v678 = vadd.f32 %v661, %v670
    %v679 = vadd.f32 %v662, %v671
    %v680 = vadd.f32 %v663, %v672
    %v681 = vadd.f32 %v664, %v673
    %v682 = vadd.f32 %v665, %v674
    %v683 = vadd.f32 %v666, %v675
    %684 = vadd.xlane.f32.xlu0 %v676
    %v685 = vpop.xlane.xlu0 %684
    %686 = vadd.xlane.f32.xlu0 %v677
    %v687 = vpop.xlane.xlu0 %686
    %688 = vadd.xlane.f32.xlu0 %v678
    %v689 = vpop.xlane.xlu0 %688
    %690 = vadd.xlane.f32.xlu0 %v679
    %v691 = vpop.xlane.xlu0 %690
    %692 = vadd.xlane.f32.xlu0 %v680
    %v693 = vpop.xlane.xlu0 %692
    %694 = vadd.xlane.f32.xlu0 %v681
    %v695 = vpop.xlane.xlu0 %694
    %696 = vadd.xlane.f32.xlu0 %v682
    %v697 = vpop.xlane.xlu0 %696
    %698 = vadd.xlane.f32.xlu0 %v683
    %v699 = vpop.xlane.xlu0 %698
    %v700 = vstv %s566
    %v701 = vadd.f32 %v685, %v700
    %v702 = vadd.f32 %v687, %v700
    %v703 = vadd.f32 %v689, %v700
    %v704 = vadd.f32 %v691, %v700
    %v705 = vadd.f32 %v693, %v700
    %v706 = vadd.f32 %v695, %v700
    %v707 = vadd.f32 %v697, %v700
    %v708 = vadd.f32 %v699, %v700
    %v709 = vxor.u32 %v701, 2147483648
    %v710 = vxor.u32 %v702, 2147483648
    %v711 = vxor.u32 %v703, 2147483648
    %v712 = vxor.u32 %v704, 2147483648
    %v713 = vxor.u32 %v705, 2147483648
    %v714 = vxor.u32 %v706, 2147483648
    %v715 = vxor.u32 %v707, 2147483648
    %v716 = vxor.u32 %v708, 2147483648
    %v717 = vmul.f32 %v709, 1.442695
    %v718 = vpow.pop %v717
    %v719 = vmul.f32 %v710, 1.442695
    %v720 = vpow.pop %v719
    %v721 = vmul.f32 %v711, 1.442695
    %v722 = vpow.pop %v721
    %v723 = vmul.f32 %v712, 1.442695
    %v724 = vpow.pop %v723
    %v725 = vmul.f32 %v713, 1.442695
    %v726 = vpow.pop %v725
    %v727 = vmul.f32 %v714, 1.442695
    %v728 = vpow.pop %v727
    %v729 = vmul.f32 %v715, 1.442695
    %v730 = vpow.pop %v729
    %v731 = vmul.f32 %v716, 1.442695
    %v732 = vpow.pop %v731
    %v733 = vadd.f32 %v718, 1.0
    %v734 = vadd.f32 %v720, 1.0
    %v735 = vadd.f32 %v722, 1.0
    %v736 = vadd.f32 %v724, 1.0
    %v737 = vadd.f32 %v726, 1.0
    %v738 = vadd.f32 %v728, 1.0
    %v739 = vadd.f32 %v730, 1.0
    %v740 = vadd.f32 %v732, 1.0
    %v741 = vrcp.pop %v733
    %v742 = vmul.f32 %v733, %v741
    %v743 = vsub.f32 1.0, %v742
    %v744 = vmul.f32 %v741, %v743
    %v745 = vadd.f32 %v741, %v744
    %vm746 = vweird.f32 %v733
    %vm747 = vweird.f32 %v741
    %vm748 = vmor %vm746, %vm747
    %v749 = vsel %vm748, %v741, %v745
    %v750 = vand.u32 2147483647, %v733
    %vm751 = vcmp.eq.f32.partialorder %v750, 8.507059e+37
    %v752 = vand.u32 %v733, 2147483648
    %v753 = vor.u32 1.1754944e-38, %v752
    %v754 = vsel %vm751, %v753, %v749
    %v755 = vmul.f32 1.0, %v754
    %v756 = vrcp.pop %v734
    %v757 = vmul.f32 %v734, %v756
    %v758 = vsub.f32 1.0, %v757
    %v759 = vmul.f32 %v756, %v758
    %v760 = vadd.f32 %v756, %v759
    %vm761 = vweird.f32 %v734
    %vm762 = vweird.f32 %v756
    %vm763 = vmor %vm761, %vm762
    %v764 = vsel %vm763, %v756, %v760
    %v765 = vand.u32 2147483647, %v734
    %vm766 = vcmp.eq.f32.partialorder %v765, 8.507059e+37
    %v767 = vand.u32 %v734, 2147483648
    %v768 = vor.u32 1.1754944e-38, %v767
    %v769 = vsel %vm766, %v768, %v764
    %v770 = vmul.f32 1.0, %v769
    %v771 = vrcp.pop %v735
    %v772 = vmul.f32 %v735, %v771
    %v773 = vsub.f32 1.0, %v772
    %v774 = vmul.f32 %v771, %v773
    %v775 = vadd.f32 %v771, %v774
    %vm776 = vweird.f32 %v735
    %vm777 = vweird.f32 %v771
    %vm778 = vmor %vm776, %vm777
    %v779 = vsel %vm778, %v771, %v775
    %v780 = vand.u32 2147483647, %v735
    %vm781 = vcmp.eq.f32.partialorder %v780, 8.507059e+37
    %v782 = vand.u32 %v735, 2147483648
    %v783 = vor.u32 1.1754944e-38, %v782
    %v784 = vsel %vm781, %v783, %v779
    %v785 = vmul.f32 1.0, %v784
    %v786 = vrcp.pop %v736
    %v787 = vmul.f32 %v736, %v786
    %v788 = vsub.f32 1.0, %v787
    %v789 = vmul.f32 %v786, %v788
    %v790 = vadd.f32 %v786, %v789
    %vm791 = vweird.f32 %v736
    %vm792 = vweird.f32 %v786
    %vm793 = vmor %vm791, %vm792
    %v794 = vsel %vm793, %v786, %v790
    %v795 = vand.u32 2147483647, %v736
    %vm796 = vcmp.eq.f32.partialorder %v795, 8.507059e+37
    %v797 = vand.u32 %v736, 2147483648
    %v798 = vor.u32 1.1754944e-38, %v797
    %v799 = vsel %vm796, %v798, %v794
    %v800 = vmul.f32 1.0, %v799
    %v801 = vrcp.pop %v737
    %v802 = vmul.f32 %v737, %v801
    %v803 = vsub.f32 1.0, %v802
    %v804 = vmul.f32 %v801, %v803
    %v805 = vadd.f32 %v801, %v804
    %vm806 = vweird.f32 %v737
    %vm807 = vweird.f32 %v801
    %vm808 = vmor %vm806, %vm807
    %v809 = vsel %vm808, %v801, %v805
    %v810 = vand.u32 2147483647, %v737
    %vm811 = vcmp.eq.f32.partialorder %v810, 8.507059e+37
    %v812 = vand.u32 %v737, 2147483648
    %v813 = vor.u32 1.1754944e-38, %v812
    %v814 = vsel %vm811, %v813, %v809
    %v815 = vmul.f32 1.0, %v814
    %v816 = vrcp.pop %v738
    %v817 = vmul.f32 %v738, %v816
    %v818 = vsub.f32 1.0, %v817
    %v819 = vmul.f32 %v816, %v818
    %v820 = vadd.f32 %v816, %v819
    %vm821 = vweird.f32 %v738
    %vm822 = vweird.f32 %v816
    %vm823 = vmor %vm821, %vm822
    %v824 = vsel %vm823, %v816, %v820
    %v825 = vand.u32 2147483647, %v738
    %vm826 = vcmp.eq.f32.partialorder %v825, 8.507059e+37
    %v827 = vand.u32 %v738, 2147483648
    %v828 = vor.u32 1.1754944e-38, %v827
    %v829 = vsel %vm826, %v828, %v824
    %v830 = vmul.f32 1.0, %v829
    %v831 = vrcp.pop %v739
    %v832 = vmul.f32 %v739, %v831
    %v833 = vsub.f32 1.0, %v832
    %v834 = vmul.f32 %v831, %v833
    %v835 = vadd.f32 %v831, %v834
    %vm836 = vweird.f32 %v739
    %vm837 = vweird.f32 %v831
    %vm838 = vmor %vm836, %vm837
    %v839 = vsel %vm838, %v831, %v835
    %v840 = vand.u32 2147483647, %v739
    %vm841 = vcmp.eq.f32.partialorder %v840, 8.507059e+37
    %v842 = vand.u32 %v739, 2147483648
    %v843 = vor.u32 1.1754944e-38, %v842
    %v844 = vsel %vm841, %v843, %v839
    %v845 = vmul.f32 1.0, %v844
    %v846 = vrcp.pop %v740
    %v847 = vmul.f32 %v740, %v846
    %v848 = vsub.f32 1.0, %v847
    %v849 = vmul.f32 %v846, %v848
    %v850 = vadd.f32 %v846, %v849
    %vm851 = vweird.f32 %v740
    %vm852 = vweird.f32 %v846
    %vm853 = vmor %vm851, %vm852
    %v854 = vsel %vm853, %v846, %v850
    %v855 = vand.u32 2147483647, %v740
    %vm856 = vcmp.eq.f32.partialorder %v855, 8.507059e+37
    %v857 = vand.u32 %v740, 2147483648
    %v858 = vor.u32 1.1754944e-38, %v857
    %v859 = vsel %vm856, %v858, %v854
    %v860 = vmul.f32 1.0, %v859
    %v861 = vsub.f32 %v637, %v567
    %v862 = vsub.f32 %v639, %v568
    %v863 = vsub.f32 %v642, %v569
    %v864 = vsub.f32 %v644, %v570
    %v865 = vsub.f32 %v647, %v571
    %v866 = vsub.f32 %v649, %v572
    %v867 = vsub.f32 %v652, %v573
    %v868 = vsub.f32 %v654, %v574
    %v869 = vmul.f32 %v755, %v861
    %v870 = vmul.f32 %v770, %v862
    %v871 = vmul.f32 %v785, %v863
    %v872 = vmul.f32 %v800, %v864
    %v873 = vmul.f32 %v815, %v865
    %v874 = vmul.f32 %v830, %v866
    %v875 = vmul.f32 %v845, %v867
    %v876 = vmul.f32 %v860, %v868
    %v877 = vadd.f32 %v567, %v869
    %v878 = vadd.f32 %v568, %v870
    %v879 = vadd.f32 %v569, %v871
    %v880 = vadd.f32 %v570, %v872
    %v881 = vadd.f32 %v571, %v873
    %v882 = vadd.f32 %v572, %v874
    %v883 = vadd.f32 %v573, %v875
    %v884 = vadd.f32 %v574, %v876
    %v885 = vpack.c.bf16 %v878, %v877
    %v886 = vpack.c.bf16 %v880, %v879
    %v887 = vpack.c.bf16 %v882, %v881
    %v888 = vpack.c.bf16 %v884, %v883
    %s889 = scalar_lea.vmem [#allocation9], 64
    %v890 = vld [vmem:[%s889] sm:$0xf]
    %v891 = vld [vmem:[%s889 + $0x4] sm:$0xf]
    %v892 = vld [vmem:[%s889 + $0x8] sm:$0xf]
    %v893 = vld [vmem:[%s889 + $0xc] sm:$0xf]
    %v894 = vld [vmem:[%s889 + $0x10] sm:$0xf]
    %v895 = vld [vmem:[%s889 + $0x14] sm:$0xf]
    %v896 = vld [vmem:[%s889 + $0x18] sm:$0xf]
    %v897 = vld [vmem:[%s889 + $0x1c] sm:$0xf]
    %v898 = vld [vmem:[%s889 + $0x20] sm:$0xf]
    %v899 = vld [vmem:[%s889 + $0x24] sm:$0xf]
    %v900 = vld [vmem:[%s889 + $0x28] sm:$0xf]
    %v901 = vld [vmem:[%s889 + $0x2c] sm:$0xf]
    %v902 = vld [vmem:[%s889 + $0x30] sm:$0xf]
    %v903 = vld [vmem:[%s889 + $0x34] sm:$0xf]
    %v904 = vld [vmem:[%s889 + $0x38] sm:$0xf]
    %v905 = vld [vmem:[%s889 + $0x3c] sm:$0xf]
    %v906 = vperm.slane %v657, 0
    %v923 = vunpack.c.l.b16 %v890
    %v924 = vunpack.c.l.b16 %v891
    %v925 = vunpack.c.l.b16 %v892
    %v926 = vunpack.c.l.b16 %v893
    %v927 = vunpack.c.l.b16 %v894
    %v928 = vunpack.c.l.b16 %v895
    %v929 = vunpack.c.l.b16 %v896
    %v930 = vunpack.c.l.b16 %v897
    %v931 = vunpack.c.l.b16 %v898
    %v932 = vunpack.c.l.b16 %v899
    %v933 = vunpack.c.l.b16 %v900
    %v934 = vunpack.c.l.b16 %v901
    %v935 = vunpack.c.l.b16 %v902
    %v936 = vunpack.c.l.b16 %v903
    %v937 = vunpack.c.l.b16 %v904
    %v938 = vunpack.c.l.b16 %v905
    %v939 = vpack.c.b16 %v924, %v923
    %v940 = vpack.c.b16 %v926, %v925
    %v941 = vpack.c.b16 %v928, %v927
    %v942 = vpack.c.b16 %v930, %v929
    %v943 = vpack.c.b16 %v932, %v931
    %v944 = vpack.c.b16 %v934, %v933
    %v945 = vpack.c.b16 %v936, %v935
    %v946 = vpack.c.b16 %v938, %v937
    %955 = vmatpush.bf16.msra.mxu0 %v946
    %956 = vmatpush.bf16.msra.mxu0 %v945
    %957 = vmatpush.bf16.msra.mxu0 %v944
    %958 = vmatpush.bf16.msra.mxu0 %v943
    %959 = vmatpush.bf16.msra.mxu0 %v942
    %960 = vmatpush.bf16.msra.mxu0 %v941
    %961 = vmatpush.bf16.msra.mxu0 %v940
    %962 = vmatpush.bf16.msra.mxu0 %v939
    %963 = vmatmul.bf16.gmra.mxu0 %v885
    %v964 = vpop.f32.mrf.mxu0
    %v965 = vadd.f32 %v906, %v964
    %v966 = vpop.f32.mrf.mxu0
    %v967 = vadd.f32 %v906, %v966
    %968 = vmatmul.bf16.gmra.mxu0 %v886
    %v969 = vpop.f32.mrf.mxu0
    %v970 = vadd.f32 %v906, %v969
    %v971 = vpop.f32.mrf.mxu0
    %v972 = vadd.f32 %v906, %v971
    %973 = vmatmul.bf16.gmra.mxu0 %v887
    %v974 = vpop.f32.mrf.mxu0
    %v975 = vadd.f32 %v906, %v974
    %v976 = vpop.f32.mrf.mxu0
    %v977 = vadd.f32 %v906, %v976
    %978 = vmatmul.bf16.gmra.mxu0 %v888
    %v979 = vpop.f32.mrf.mxu0
    %v980 = vadd.f32 %v906, %v979
    %v981 = vpop.f32.mrf.mxu0
    %v982 = vadd.f32 %v906, %v981
    %983 = vdwg.mxu0
    %v984 = vsub.f32 %v965, %v877
    %v985 = vsub.f32 %v967, %v878
    %v986 = vsub.f32 %v970, %v879
    %v987 = vsub.f32 %v972, %v880
    %v988 = vsub.f32 %v975, %v881
    %v989 = vsub.f32 %v977, %v882
    %v990 = vsub.f32 %v980, %v883
    %v991 = vsub.f32 %v982, %v884
    %v992 = vstv %s565
    %v993 = vmul.f32 %v992, %v984
    %v994 = vmul.f32 %v992, %v985
    %v995 = vmul.f32 %v992, %v986
    %v996 = vmul.f32 %v992, %v987
    %v997 = vmul.f32 %v992, %v988
    %v998 = vmul.f32 %v992, %v989
    %v999 = vmul.f32 %v992, %v990
    %v1000 = vmul.f32 %v992, %v991
    %v1001 = vadd.f32 %v877, %v993
    %v1002 = vadd.f32 %v878, %v994
    %v1003 = vadd.f32 %v879, %v995
    %v1004 = vadd.f32 %v880, %v996
    %v1005 = vadd.f32 %v881, %v997
    %v1006 = vadd.f32 %v882, %v998
    %v1007 = vadd.f32 %v883, %v999
    %v1008 = vadd.f32 %v884, %v1000
    %v1009 = vmul.f32 %v1001, 0.01
    %v1010 = vmul.f32 %v1002, 0.01
    %v1011 = vmul.f32 %v1003, 0.01
    %v1012 = vmul.f32 %v1004, 0.01
    %v1013 = vmul.f32 %v1005, 0.01
    %v1014 = vmul.f32 %v1006, 0.01
    %v1015 = vmul.f32 %v1007, 0.01
    %v1016 = vmul.f32 %v1008, 0.01
    %v1017 = vmax.f32 %v1001, %v1009
    %v1018 = vmax.f32 %v1002, %v1010
    %v1019 = vmax.f32 %v1003, %v1011
    %v1020 = vmax.f32 %v1004, %v1012
    %v1021 = vmax.f32 %v1005, %v1013
    %v1022 = vmax.f32 %v1006, %v1014
    %v1023 = vmax.f32 %v1007, %v1015
    %v1024 = vmax.f32 %v1008, %v1016
    %1025 = vst [vmem:[#allocation10] sm:$0xff] %v1017
    %1026 = vst [vmem:[#allocation10 + $0x8] sm:$0xff] %v1018
    %1027 = vst [vmem:[#allocation10 + $0x10] sm:$0xff] %v1019
    %1028 = vst [vmem:[#allocation10 + $0x18] sm:$0xff] %v1020
    %1029 = vst [vmem:[#allocation10 + $0x20] sm:$0xff] %v1021
    %1030 = vst [vmem:[#allocation10 + $0x28] sm:$0xff] %v1022
    %1031 = vst [vmem:[#allocation10 + $0x30] sm:$0xff] %v1023
    %1032 = vst [vmem:[#allocation10 + $0x38] sm:$0xff] %v1024
    // Predicated region
    $region38: #{tpu_custom_call.1} parent=1 // pred_check
      _
    $region39: #{tpu_custom_call.1} parent=1 // pred_check_branch
      %1034 = sbr.rel (0) target = $region41
    $region40: #{tpu_custom_call.1} parent=1 // pred_region
      %1036 = vsyncadd [#allocation4], 0
      %s1037 = sshll.u32 [#allocation10], 4
      %s1038 = int_to_ptr.vmem [resolvable:$true] %s1037
      %s1039 = sshll.u32 %s5, 4
      %s1040 = int_to_ptr.hbm [resolvable:$true] %s1039
      %1045 = dma.vmem_to_hbm [thread:$0]  %s1038, 1024, %s1040, [#allocation4], 128, 128, 8
    $region41: #{tpu_custom_call.1} parent=1 // pred_fallthru
      _
    // Predicated region
    $region42: #{tpu_custom_call.1} parent=1 // pred_check
      _
    $region43: #{tpu_custom_call.1} parent=1 // pred_check_branch
      %1047 = sbr.rel (0) target = $region45
    $region44: #{tpu_custom_call.1} parent=1 // pred_region
      %1049 = dma.done [#allocation4], 1024
    $region45: #{tpu_custom_call.1} parent=1 // pred_fallthru
      _
    %1050 = vsyncpa [#allocation3], 1
    %1051 = vsyncpa [#allocation8], 1
    %1052 = vsyncpa [#allocation4], 1
    %1053 = vsyncpa [#allocation5], 1

</llo_original>
